<compile_context>
chip_gen: v7x
topology: tpu7x:2x2x1
jax: 0.10.0
libtpu: 0.0.40
codegen_flags: <defaults>
</compile_context>

<pallas_src>
import functools

import jax
import jax.numpy as jnp
from jax.experimental import pallas as pl
from jax.experimental.pallas import tpu as pltpu


def _round_up(x, m):
    return ((x + m - 1) // m) * m


def _mlp_kernel(x_ref, w1_ref, b1_ref, w2_ref, b2_ref, o_ref, *, chunk):
    """One (1, C, TS) spatial slab of the per-pixel MLP.

    x_ref : (1, C, TS) VMEM activation tile (channels on sublanes, spatial on lanes)
    w*_ref: (C, C)  VMEM weights, layout (C_out, C_in), constant block index
    b*_ref: (C, 1)  VMEM biases
    o_ref : (1, C, TS) VMEM output tile
    chunk : inner lane-chunk size (multiple of 128, divides TS)
    """
    C = x_ref.shape[1]
    TS = x_ref.shape[2]

    # Hoisted: weights/biases read once per grid step (tiny).
    w1 = w1_ref[...]              # (C, C)
    b1 = b1_ref[...]              # (C, 1)
    w2 = w2_ref[...]
    b2 = b2_ref[...]

    def affine(w, b, x):
        # x: (C, chunk). Returns w @ x + b as dense (C, chunk) VPU FMAs:
        #   acc += w[:, ci] (broadcast along lanes) * x[ci, :] (broadcast along sublanes)
        acc = None
        for ci in range(C):                                    # unrolled; C is tiny
            x_b = jnp.broadcast_to(x[ci:ci + 1, :], (C, chunk))
            term = w[:, ci:ci + 1] * x_b
            acc = term if acc is None else acc + term
        return acc + b                                         # lane-broadcast bias

    @pl.loop(0, TS // chunk)
    def _(j):
        off = pl.multiple_of(j * chunk, chunk)
        x = x_ref[0, :, pl.ds(off, chunk)]                     # (C, chunk) lane-dense load
        h = jnp.tanh(affine(w1, b1, x))                        # EUP tanh, dense (C, chunk)
        y = affine(w2, b2, h)
        o_ref[0, :, pl.ds(off, chunk)] = y.astype(o_ref.dtype) # dense, unmasked store


def mlp_forward(x_nchw, w1, b1, w2, b2, *, tile_s=65536, chunk=1024):
    """x_nchw: (N, C, H, W). w1/w2: (C_out, C_in, 1, 1) PyTorch conv weights.
    b1/b2: (C,). Returns (N, C, H, W)."""
    N, C, H, W = x_nchw.shape
    HW = H * W
    itemsize = jnp.dtype(x_nchw.dtype).itemsize

    # 1x1 conv weights: (Cout, Cin, 1, 1) -> (Cout, Cin); biases -> (C, 1) columns.
    w1_mat = w1[:, :, 0, 0].astype(jnp.float32)
    w2_mat = w2[:, :, 0, 0].astype(jnp.float32)
    b1_col = b1.reshape(C, 1).astype(jnp.float32)
    b2_col = b2.reshape(C, 1).astype(jnp.float32)

    # Lane-dense spatial tiling: tile is a multiple of 128. No wrapper pad/slice:
    # a ragged final block (HW % tile_s != 0) is handled by Pallas' bounded DMA,
    # which is safe because the op is elementwise in the spatial dimension.
    tile_s = max(128, min(tile_s, _round_up(HW, 128)))
    tile_s = _round_up(tile_s, 128)
    chunk = max(128, min(chunk, tile_s))
    chunk = (chunk // 128) * 128
    while tile_s % chunk != 0:        # terminates: 128 always divides tile_s
        chunk -= 128

    x_flat = x_nchw.reshape(N, C, HW)  # view, no data movement
    grid = (N, pl.cdiv(HW, tile_s))

    M = N * HW
    cost = pl.CostEstimate(
        flops=4 * M * C * C,           # two layers of 2*M*C*C
        transcendentals=M * C,         # tanh
        bytes_accessed=2 * M * C * itemsize + 2 * C * C * 4 + 2 * C * 4,
    )

    act_spec = pl.BlockSpec((1, C, tile_s), lambda n, s: (n, 0, s))
    w_spec = pl.BlockSpec((C, C), lambda n, s: (0, 0))   # constant index -> fetched once
    b_spec = pl.BlockSpec((C, 1), lambda n, s: (0, 0))

    # VMEM budget: double-buffered in + out activation tiles plus tiny weights.
    blk_bytes = C * tile_s * itemsize
    vmem_limit = max(32 * 1024 * 1024, 8 * blk_bytes)    # stays well under v7x's 64 MiB

    out_flat = pl.pallas_call(
        functools.partial(_mlp_kernel, chunk=chunk),
        out_shape=jax.ShapeDtypeStruct((N, C, HW), x_nchw.dtype),
        grid_spec=pltpu.PrefetchScalarGridSpec(
            num_scalar_prefetch=0,
            grid=grid,
            in_specs=[
                act_spec,   # x tile (1, C, TS)
                w_spec,     # W1 (Cout, Cin), VMEM-resident
                b_spec,     # b1 (C, 1)
                w_spec,     # W2
                b_spec,     # b2
            ],
            out_specs=act_spec,
        ),
        compiler_params=pltpu.CompilerParams(
            dimension_semantics=("parallel", "parallel"),
            vmem_limit_bytes=vmem_limit,
        ),
        cost_estimate=cost,
    )(x_flat, w1_mat, b1_col, w2_mat, b2_col)

    return out_flat.reshape(N, C, H, W)


def _reference(x_nchw, w1, b1, w2, b2):
    # Plain-JAX reference of the PyTorch forward for sanity checking.
    def conv1x1(x, w, b):
        y = jnp.einsum("nchw,oc->nohw", x, w[:, :, 0, 0])
        return y + b[None, :, None, None]

    x1 = jnp.tanh(conv1x1(x_nchw, w1, b1))
    return conv1x1(x1, w2, b2)


if __name__ == "__main__":
    key = jax.random.PRNGKey(0)
    k_x, k_w1, k_b1, k_w2, k_b2 = jax.random.split(key, 5)

    N, C, H, W = 2, 4, 16, 16
    x = jax.random.normal(k_x, (N, C, H, W), dtype=jnp.float32)

    # Deterministic parameter init (shapes match nn.Conv2d(channel, channel, 1)).
    fan_in = C * 1 * 1
    bound = 1.0 / (fan_in ** 0.5)
    w1 = jax.random.uniform(k_w1, (C, C, 1, 1), jnp.float32, -bound, bound)
    b1 = jax.random.uniform(k_b1, (C,), jnp.float32, -bound, bound)
    w2 = jax.random.uniform(k_w2, (C, C, 1, 1), jnp.float32, -bound, bound)
    b2 = jax.random.uniform(k_b2, (C,), jnp.float32, -bound, bound)

    y = mlp_forward(x, w1, b1, w2, b2)
    y = jax.block_until_ready(y)

    y_ref = _reference(x, w1, b1, w2, b2)
    assert y.shape == (N, C, H, W)
    assert jnp.allclose(y, y_ref, atol=1e-5, rtol=1e-5)

    print("KERNEL_OK")
</pallas_src>

<mosaic_0001>
module attributes {stable_mosaic.version = 11 : i64} {
  func.func @_mlp_kernel(%arg0: i32, %arg1: i32, %arg2: memref<1x4x256xf32, #tpu.memory_space<vmem>>, %arg3: memref<4x4xf32, #tpu.memory_space<vmem>>, %arg4: memref<4x1xf32, #tpu.memory_space<vmem>>, %arg5: memref<4x4xf32, #tpu.memory_space<vmem>>, %arg6: memref<4x1xf32, #tpu.memory_space<vmem>>, %arg7: memref<1x4x256xf32, #tpu.memory_space<vmem>>) attributes {dimension_semantics = [#tpu.dimension_semantics<parallel>, #tpu.dimension_semantics<parallel>], iteration_bounds = array<i64: 2, 1>, scalar_prefetch = 0 : i64, scratch_operands = 0 : i64, tpu.core_type = #tpu.core_type<tc>, window_params = [{transform_indices = @transform_0, window_bounds = array<i64: 1, 4, 256>}, {pipeline_mode = #tpu.pipeline_mode<synchronous>, transform_indices = @transform_1, window_bounds = array<i64: 4, 4>}, {pipeline_mode = #tpu.pipeline_mode<synchronous>, transform_indices = @transform_2, window_bounds = array<i64: 4, 1>}, {pipeline_mode = #tpu.pipeline_mode<synchronous>, transform_indices = @transform_3, window_bounds = array<i64: 4, 4>}, {pipeline_mode = #tpu.pipeline_mode<synchronous>, transform_indices = @transform_4, window_bounds = array<i64: 4, 1>}, {transform_indices = @transform_5, window_bounds = array<i64: 1, 4, 256>}]} {
    %c0 = arith.constant 0 : index
    %c0_0 = arith.constant 0 : index
    %0 = vector.load %arg3[%c0, %c0_0] : memref<4x4xf32, #tpu.memory_space<vmem>>, vector<4x4xf32>
    %c0_1 = arith.constant 0 : index
    %c0_2 = arith.constant 0 : index
    %1 = vector.load %arg4[%c0_1, %c0_2] : memref<4x1xf32, #tpu.memory_space<vmem>>, vector<4x1xf32>
    %c0_3 = arith.constant 0 : index
    %c0_4 = arith.constant 0 : index
    %2 = vector.load %arg5[%c0_3, %c0_4] : memref<4x4xf32, #tpu.memory_space<vmem>>, vector<4x4xf32>
    %c0_5 = arith.constant 0 : index
    %c0_6 = arith.constant 0 : index
    %3 = vector.load %arg6[%c0_5, %c0_6] : memref<4x1xf32, #tpu.memory_space<vmem>>, vector<4x1xf32>
    %c0_i32 = arith.constant 0 : i32
    %c1_i32 = arith.constant 1 : i32
    %4 = arith.muli %c0_i32, %c1_i32 : i32
    %c0_i32_7 = arith.constant 0 : i32
    %5 = arith.addi %c0_i32_7, %4 : i32
    %c256_i32 = arith.constant 256 : i32
    %6 = arith.muli %5, %c256_i32 : i32
    %7 = tpu.assume_multiple %6, 256 : i32
    %c0_8 = arith.constant 0 : index
    %c0_9 = arith.constant 0 : index
    %8 = arith.index_cast %7 : i32 to index
    %9 = vector.load %arg2[%c0_8, %c0_9, %8] : memref<1x4x256xf32, #tpu.memory_space<vmem>>, vector<1x4x256xf32>
    %10 = vector.shape_cast %9 : vector<1x4x256xf32> to vector<4x256xf32>
    %11 = vector.extract_strided_slice %10 {offsets = [0, 0], sizes = [1, 256], strides = [1, 1]} : vector<4x256xf32> to vector<1x256xf32>
    %12 = vector.shape_cast %11 : vector<1x256xf32> to vector<1x256xf32>
    %13 = vector.broadcast %12 : vector<1x256xf32> to vector<4x256xf32>
    %14 = vector.extract_strided_slice %0 {offsets = [0, 0], sizes = [4, 1], strides = [1, 1]} : vector<4x4xf32> to vector<4x1xf32>
    %15 = vector.broadcast %14 : vector<4x1xf32> to vector<4x256xf32>
    %16 = arith.mulf %15, %13 : vector<4x256xf32>
    %17 = vector.extract_strided_slice %10 {offsets = [1, 0], sizes = [1, 256], strides = [1, 1]} : vector<4x256xf32> to vector<1x256xf32>
    %18 = vector.shape_cast %17 : vector<1x256xf32> to vector<1x256xf32>
    %19 = vector.broadcast %18 : vector<1x256xf32> to vector<4x256xf32>
    %20 = vector.extract_strided_slice %0 {offsets = [0, 1], sizes = [4, 1], strides = [1, 1]} : vector<4x4xf32> to vector<4x1xf32>
    %21 = vector.broadcast %20 : vector<4x1xf32> to vector<4x256xf32>
    %22 = arith.mulf %21, %19 : vector<4x256xf32>
    %23 = arith.addf %16, %22 : vector<4x256xf32>
    %24 = vector.extract_strided_slice %10 {offsets = [2, 0], sizes = [1, 256], strides = [1, 1]} : vector<4x256xf32> to vector<1x256xf32>
    %25 = vector.shape_cast %24 : vector<1x256xf32> to vector<1x256xf32>
    %26 = vector.broadcast %25 : vector<1x256xf32> to vector<4x256xf32>
    %27 = vector.extract_strided_slice %0 {offsets = [0, 2], sizes = [4, 1], strides = [1, 1]} : vector<4x4xf32> to vector<4x1xf32>
    %28 = vector.broadcast %27 : vector<4x1xf32> to vector<4x256xf32>
    %29 = arith.mulf %28, %26 : vector<4x256xf32>
    %30 = arith.addf %23, %29 : vector<4x256xf32>
    %31 = vector.extract_strided_slice %10 {offsets = [3, 0], sizes = [1, 256], strides = [1, 1]} : vector<4x256xf32> to vector<1x256xf32>
    %32 = vector.shape_cast %31 : vector<1x256xf32> to vector<1x256xf32>
    %33 = vector.broadcast %32 : vector<1x256xf32> to vector<4x256xf32>
    %34 = vector.extract_strided_slice %0 {offsets = [0, 3], sizes = [4, 1], strides = [1, 1]} : vector<4x4xf32> to vector<4x1xf32>
    %35 = vector.broadcast %34 : vector<4x1xf32> to vector<4x256xf32>
    %36 = arith.mulf %35, %33 : vector<4x256xf32>
    %37 = arith.addf %30, %36 : vector<4x256xf32>
    %38 = vector.broadcast %1 : vector<4x1xf32> to vector<4x256xf32>
    %39 = arith.addf %37, %38 : vector<4x256xf32>
    %40 = math.tanh %39 : vector<4x256xf32>
    %41 = vector.extract_strided_slice %40 {offsets = [0, 0], sizes = [1, 256], strides = [1, 1]} : vector<4x256xf32> to vector<1x256xf32>
    %42 = vector.shape_cast %41 : vector<1x256xf32> to vector<1x256xf32>
    %43 = vector.broadcast %42 : vector<1x256xf32> to vector<4x256xf32>
    %44 = vector.extract_strided_slice %2 {offsets = [0, 0], sizes = [4, 1], strides = [1, 1]} : vector<4x4xf32> to vector<4x1xf32>
    %45 = vector.broadcast %44 : vector<4x1xf32> to vector<4x256xf32>
    %46 = arith.mulf %45, %43 : vector<4x256xf32>
    %47 = vector.extract_strided_slice %40 {offsets = [1, 0], sizes = [1, 256], strides = [1, 1]} : vector<4x256xf32> to vector<1x256xf32>
    %48 = vector.shape_cast %47 : vector<1x256xf32> to vector<1x256xf32>
    %49 = vector.broadcast %48 : vector<1x256xf32> to vector<4x256xf32>
    %50 = vector.extract_strided_slice %2 {offsets = [0, 1], sizes = [4, 1], strides = [1, 1]} : vector<4x4xf32> to vector<4x1xf32>
    %51 = vector.broadcast %50 : vector<4x1xf32> to vector<4x256xf32>
    %52 = arith.mulf %51, %49 : vector<4x256xf32>
    %53 = arith.addf %46, %52 : vector<4x256xf32>
    %54 = vector.extract_strided_slice %40 {offsets = [2, 0], sizes = [1, 256], strides = [1, 1]} : vector<4x256xf32> to vector<1x256xf32>
    %55 = vector.shape_cast %54 : vector<1x256xf32> to vector<1x256xf32>
    %56 = vector.broadcast %55 : vector<1x256xf32> to vector<4x256xf32>
    %57 = vector.extract_strided_slice %2 {offsets = [0, 2], sizes = [4, 1], strides = [1, 1]} : vector<4x4xf32> to vector<4x1xf32>
    %58 = vector.broadcast %57 : vector<4x1xf32> to vector<4x256xf32>
    %59 = arith.mulf %58, %56 : vector<4x256xf32>
    %60 = arith.addf %53, %59 : vector<4x256xf32>
    %61 = vector.extract_strided_slice %40 {offsets = [3, 0], sizes = [1, 256], strides = [1, 1]} : vector<4x256xf32> to vector<1x256xf32>
    %62 = vector.shape_cast %61 : vector<1x256xf32> to vector<1x256xf32>
    %63 = vector.broadcast %62 : vector<1x256xf32> to vector<4x256xf32>
    %64 = vector.extract_strided_slice %2 {offsets = [0, 3], sizes = [4, 1], strides = [1, 1]} : vector<4x4xf32> to vector<4x1xf32>
    %65 = vector.broadcast %64 : vector<4x1xf32> to vector<4x256xf32>
    %66 = arith.mulf %65, %63 : vector<4x256xf32>
    %67 = arith.addf %60, %66 : vector<4x256xf32>
    %68 = vector.broadcast %3 : vector<4x1xf32> to vector<4x256xf32>
    %69 = arith.addf %67, %68 : vector<4x256xf32>
    %c0_10 = arith.constant 0 : index
    %c0_11 = arith.constant 0 : index
    %70 = arith.index_cast %7 : i32 to index
    %71 = vector.load %arg7[%c0_10, %c0_11, %70] : memref<1x4x256xf32, #tpu.memory_space<vmem>>, vector<1x4x256xf32>
    %72 = vector.shape_cast %71 : vector<1x4x256xf32> to vector<4x256xf32>
    %73 = vector.shape_cast %69 : vector<4x256xf32> to vector<1x4x256xf32>
    tpu.vector_store %arg7[%c0_10, %c0_11, %70], %73 {strides = array<i32>} : memref<1x4x256xf32, #tpu.memory_space<vmem>>, vector<1x4x256xf32>,
    %c1_i32_12 = arith.constant 1 : i32
    return
  }
  func.func @transform_0(%arg0: i32, %arg1: i32) -> (i32, i32, i32) {
    %c0_i32 = arith.constant 0 : i32
    %c0_i32_0 = arith.constant 0 : i32
    return %arg0, %c0_i32, %arg1 : i32, i32, i32
  }
  func.func @transform_1(%arg0: i32, %arg1: i32) -> (i32, i32) {
    %c0_i32 = arith.constant 0 : i32
    %c0_i32_0 = arith.constant 0 : i32
    %c0_i32_1 = arith.constant 0 : i32
    return %c0_i32, %c0_i32_0 : i32, i32
  }
  func.func @transform_2(%arg0: i32, %arg1: i32) -> (i32, i32) {
    %c0_i32 = arith.constant 0 : i32
    %c0_i32_0 = arith.constant 0 : i32
    %c0_i32_1 = arith.constant 0 : i32
    return %c0_i32, %c0_i32_0 : i32, i32
  }
  func.func @transform_3(%arg0: i32, %arg1: i32) -> (i32, i32) {
    %c0_i32 = arith.constant 0 : i32
    %c0_i32_0 = arith.constant 0 : i32
    %c0_i32_1 = arith.constant 0 : i32
    return %c0_i32, %c0_i32_0 : i32, i32
  }
  func.func @transform_4(%arg0: i32, %arg1: i32) -> (i32, i32) {
    %c0_i32 = arith.constant 0 : i32
    %c0_i32_0 = arith.constant 0 : i32
    %c0_i32_1 = arith.constant 0 : i32
    return %c0_i32, %c0_i32_0 : i32, i32
  }
  func.func @transform_5(%arg0: i32, %arg1: i32) -> (i32, i32, i32) {
    %c0_i32 = arith.constant 0 : i32
    %c0_i32_0 = arith.constant 0 : i32
    return %arg0, %c0_i32, %arg1 : i32, i32, i32
  }
}

</mosaic_0001>

<llo_original>
// kernel: tpu_custom_call.1
$region0: #{tpu_custom_call.1}
  #allocation0 [shape = 'u32[]', space=smem, size = 0x4, offset = 0x4, fixed_abs, tag = 'smem constant byte address 0x4 - core index']
  #allocation1 [shape = 'u32[144,128]{1,0:T(1,128)}', space=vmem, size = 0x12000, scoped, tag = 'internal scratch']
  %s0 = inlined_call_operand.hbm [shape: f32[2,4,256], index: 0, kind: input, shape index: {}]
  %s1 = inlined_call_operand.vmem [shape: f32[4,4], index: 1, kind: input, shape index: {}]
  %s2 = inlined_call_operand.vmem [shape: f32[4,1], index: 2, kind: input, shape index: {}]
  %s3 = inlined_call_operand.vmem [shape: f32[4,4], index: 3, kind: input, shape index: {}]
  %s4 = inlined_call_operand.vmem [shape: f32[4,1], index: 4, kind: input, shape index: {}]
  %s5 = inlined_call_operand.hbm [shape: f32[2,4,256], index: 5, kind: output, shape index: {}]
  %s6 = sld [smem:[#allocation0]]
  $region57: #{tpu_custom_call.1} parent=0
    _
  %s8 = ssub.s32 1, %s6
  %s9 = scalar_select 0, %s8, %s6
  $region1: #{tpu_custom_call.1} parent=0
    #allocation2 [shape = 'u8[8192]{0}', space=vmem, size = 0x2000, scoped, tag = 'input window, operand 0']
    #allocation3 [shape = 's32[2]{0}', space=sflag, size = 0x8, scoped, tag = 'scoped memory for tpu_custom_call.1']
    #allocation4 [shape = 's32[2]{0}', space=sflag, size = 0x8, scoped, tag = 'scoped memory for tpu_custom_call.1']
    #allocation5 [shape = 'u8[8192]{0}', space=vmem, size = 0x2000, scoped, tag = 'output window, operand 0']
    %10 = vsyncpa [#allocation3], 0
    %s11 = scalar_lea.sflag [#allocation3], 1
    %12 = vsyncpa %s11, 0
    %13 = vsyncpa [#allocation4], 0
    %s14 = scalar_lea.sflag [#allocation4], 1
    %15 = vsyncpa %s14, 0
    loop: start=0, step=1, limit=4
    $region2: #{tpu_custom_call.1} parent=1 // loop_pre_header
      _
    $region3: #{tpu_custom_call.1} parent=1 // loop_header
      %s17 = sphi 0, %s21
      %p18 = scmp.ge.s32.totalorder %s17, 4
      %s24 = sphi 0, %s36
      %s25 = sphi 0, %s32
      %s26 = sphi 0, %s24
      %s27 = sphi 0, %s25
      %s28 = sphi 0, %s26
      %s29 = sphi 0, %s27
      %s41 = sphi 0, %s43
      %s44 = sphi 0, %s41
      %s45 = sphi 0, %s44
      %s61 = sphi 0, %s45
      %s65 = sphi 0, %s65
      %s67 = sphi 0, %s65
      %s68 = sphi 0, %s67
      %s82 = sphi 0, %s68
      %s86 = sphi 0, %s86
      %s88 = sphi 0, %s86
      %s89 = sphi 0, %s88
      %s103 = sphi 0, %s89
      %s107 = sphi 0, %s107
      %s109 = sphi 0, %s107
      %s110 = sphi 0, %s109
      %s124 = sphi 0, %s110
      %s128 = sphi 0, %s128
      %s130 = sphi 0, %s128
      %s131 = sphi 0, %s130
      %s145 = sphi 0, %s131
      %s153 = sphi 0, %s155
      %s156 = sphi 0, %s153
      %s157 = sphi 0, %s156
      %s173 = sphi 0, %s157
    $region4: #{tpu_custom_call.1} parent=1 // loop_header_branch
      %20 = sbr.rel (%p18) target = $region8
    $region5: #{tpu_custom_call.1} parent=1 // loop_body
      %s22 = ssub.s32 %s17, 1
      %s23 = ssub.s32 %s17, 2
      %s30 = sadd.s32 1, %s25
      %p31 = scmp.ge.s32.totalorder %s30, 1
      %s32 = scalar_select %p31, 0, %s30
      %s33 = sadd.s32 1, %s24
      %s34 = scalar_select %p31, %s33, %s24
      %p35 = scmp.ge.s32.totalorder %s34, 2
      %s36 = scalar_select %p35, 0, %s34
      %s37 = ssub.s32 %s24, %s36
      %s38 = ssub.s32 %s25, %s32
      %s39 = sor.u32 %s37, %s38
      %p40 = scmp.eq.s32.totalorder %s39, 0
      %s42 = sadd.s32 %s41, 1
      %s43 = scalar_select %p40, %s41, %s42
      %p46 = pneg %p40
      %p47 = scmp.eq.s32.totalorder %s17, 1
      %p48 = por %p46, %p47
      %p49 = scmp.ne.s32.totalorder %s41, %s44
      %p50 = scmp.eq.s32.totalorder %s17, 0
      %p51 = por %p49, %p50
      %p52 = scmp.ne.s32.totalorder %s41, %s44
      %p53 = scmp.eq.s32.totalorder %s22, 1
      %p54 = por %p52, %p53
      %p55 = scmp.ne.s32.totalorder %s44, %s45
      %p56 = scmp.eq.s32.totalorder %s22, 0
      %p57 = por %p55, %p56
      %p58 = scmp.ne.s32.totalorder %s44, %s45
      %p59 = scmp.eq.s32.totalorder %s23, 1
      %p60 = por %p58, %p59
      %p62 = scmp.ne.s32.totalorder %s45, %s61
      %p63 = scmp.eq.s32.totalorder %s23, 0
      %p64 = por %p62, %p63
      %s66 = sadd.s32 %s65, 1
      %p69 = scmp.eq.s32.totalorder %s17, 1
      %p70 = scmp.ne.s32.totalorder %s65, %s67
      %p71 = scmp.eq.s32.totalorder %s17, 0
      %p72 = por %p70, %p71
      %p73 = scmp.ne.s32.totalorder %s65, %s67
      %p74 = scmp.eq.s32.totalorder %s22, 1
      %p75 = por %p73, %p74
      %p76 = scmp.ne.s32.totalorder %s67, %s68
      %p77 = scmp.eq.s32.totalorder %s22, 0
      %p78 = por %p76, %p77
      %p79 = scmp.ne.s32.totalorder %s67, %s68
      %p80 = scmp.eq.s32.totalorder %s23, 1
      %p81 = por %p79, %p80
      %p83 = scmp.ne.s32.totalorder %s68, %s82
      %p84 = scmp.eq.s32.totalorder %s23, 0
      %p85 = por %p83, %p84
      %s87 = sadd.s32 %s86, 1
      %p90 = scmp.eq.s32.totalorder %s17, 1
      %p91 = scmp.ne.s32.totalorder %s86, %s88
      %p92 = scmp.eq.s32.totalorder %s17, 0
      %p93 = por %p91, %p92
      %p94 = scmp.ne.s32.totalorder %s86, %s88
      %p95 = scmp.eq.s32.totalorder %s22, 1
      %p96 = por %p94, %p95
      %p97 = scmp.ne.s32.totalorder %s88, %s89
      %p98 = scmp.eq.s32.totalorder %s22, 0
      %p99 = por %p97, %p98
      %p100 = scmp.ne.s32.totalorder %s88, %s89
      %p101 = scmp.eq.s32.totalorder %s23, 1
      %p102 = por %p100, %p101
      %p104 = scmp.ne.s32.totalorder %s89, %s103
      %p105 = scmp.eq.s32.totalorder %s23, 0
      %p106 = por %p104, %p105
      %s108 = sadd.s32 %s107, 1
      %p111 = scmp.eq.s32.totalorder %s17, 1
      %p112 = scmp.ne.s32.totalorder %s107, %s109
      %p113 = scmp.eq.s32.totalorder %s17, 0
      %p114 = por %p112, %p113
      %p115 = scmp.ne.s32.totalorder %s107, %s109
      %p116 = scmp.eq.s32.totalorder %s22, 1
      %p117 = por %p115, %p116
      %p118 = scmp.ne.s32.totalorder %s109, %s110
      %p119 = scmp.eq.s32.totalorder %s22, 0
      %p120 = por %p118, %p119
      %p121 = scmp.ne.s32.totalorder %s109, %s110
      %p122 = scmp.eq.s32.totalorder %s23, 1
      %p123 = por %p121, %p122
      %p125 = scmp.ne.s32.totalorder %s110, %s124
      %p126 = scmp.eq.s32.totalorder %s23, 0
      %p127 = por %p125, %p126
      %s129 = sadd.s32 %s128, 1
      %p132 = scmp.eq.s32.totalorder %s17, 1
      %p133 = scmp.ne.s32.totalorder %s128, %s130
      %p134 = scmp.eq.s32.totalorder %s17, 0
      %p135 = por %p133, %p134
      %p136 = scmp.ne.s32.totalorder %s128, %s130
      %p137 = scmp.eq.s32.totalorder %s22, 1
      %p138 = por %p136, %p137
      %p139 = scmp.ne.s32.totalorder %s130, %s131
      %p140 = scmp.eq.s32.totalorder %s22, 0
      %p141 = por %p139, %p140
      %p142 = scmp.ne.s32.totalorder %s130, %s131
      %p143 = scmp.eq.s32.totalorder %s23, 1
      %p144 = por %p142, %p143
      %p146 = scmp.ne.s32.totalorder %s131, %s145
      %p147 = scmp.eq.s32.totalorder %s23, 0
      %p148 = por %p146, %p147
      %s149 = ssub.s32 %s24, %s36
      %s150 = ssub.s32 %s25, %s32
      %s151 = sor.u32 %s149, %s150
      %p152 = scmp.eq.s32.totalorder %s151, 0
      %s154 = sadd.s32 %s153, 1
      %s155 = scalar_select %p152, %s153, %s154
      %p158 = pneg %p152
      %p159 = scmp.eq.s32.totalorder %s17, 1
      %p160 = por %p158, %p159
      %p161 = scmp.ne.s32.totalorder %s153, %s156
      %p162 = scmp.eq.s32.totalorder %s17, 0
      %p163 = por %p161, %p162
      %p164 = scmp.ne.s32.totalorder %s153, %s156
      %p165 = scmp.eq.s32.totalorder %s22, 1
      %p166 = por %p164, %p165
      %p167 = scmp.ne.s32.totalorder %s156, %s157
      %p168 = scmp.eq.s32.totalorder %s22, 0
      %p169 = por %p167, %p168
      %p170 = scmp.ne.s32.totalorder %s156, %s157
      %p171 = scmp.eq.s32.totalorder %s23, 1
      %p172 = por %p170, %p171
      %p174 = scmp.ne.s32.totalorder %s157, %s173
      %p175 = scmp.eq.s32.totalorder %s23, 0
      %p176 = por %p174, %p175
      %p177 = scmp.le.s32.totalorder 1, %s17
      %p178 = scmp.lt.s32.totalorder %s17, 3
      %p179 = pnand %p177, %p178
      %p180 = pneg %p179
      // Predicated region
      $region9: #{tpu_custom_call.1} parent=5 // pred_check
        _
      $region10: #{tpu_custom_call.1} parent=5 // pred_check_branch
        %182 = sbr.rel (%p179) target = $region12
      $region11: #{tpu_custom_call.1} parent=5 // pred_region
        %s183 = ssub.s32 %s17, 1
        // Predicated region
        $region13: #{tpu_custom_call.1} parent=11 // pred_check
          %p184 = pneg %p78
        $region14: #{tpu_custom_call.1} parent=11 // pred_check_branch
          %186 = sbr.rel (%p184) target = $region16
        $region15: #{tpu_custom_call.1} parent=11 // pred_region
          _
        $region16: #{tpu_custom_call.1} parent=11 // pred_fallthru
          _
        // Predicated region
        $region17: #{tpu_custom_call.1} parent=11 // pred_check
          %p187 = pneg %p99
        $region18: #{tpu_custom_call.1} parent=11 // pred_check_branch
          %189 = sbr.rel (%p187) target = $region20
        $region19: #{tpu_custom_call.1} parent=11 // pred_region
          _
        $region20: #{tpu_custom_call.1} parent=11 // pred_fallthru
          _
        // Predicated region
        $region21: #{tpu_custom_call.1} parent=11 // pred_check
          %p190 = pneg %p120
        $region22: #{tpu_custom_call.1} parent=11 // pred_check_branch
          %192 = sbr.rel (%p190) target = $region24
        $region23: #{tpu_custom_call.1} parent=11 // pred_region
          _
        $region24: #{tpu_custom_call.1} parent=11 // pred_fallthru
          _
        // Predicated region
        $region25: #{tpu_custom_call.1} parent=11 // pred_check
          %p193 = pneg %p141
        $region26: #{tpu_custom_call.1} parent=11 // pred_check_branch
          %195 = sbr.rel (%p193) target = $region28
        $region27: #{tpu_custom_call.1} parent=11 // pred_region
          _
        $region28: #{tpu_custom_call.1} parent=11 // pred_fallthru
          _
      $region12: #{tpu_custom_call.1} parent=5 // pred_fallthru
        _
      %p196 = scmp.lt.s32.totalorder %s17, 2
      // Predicated region
      $region29: #{tpu_custom_call.1} parent=5 // pred_check
        %p197 = pneg %p196
      $region30: #{tpu_custom_call.1} parent=5 // pred_check_branch
        %199 = sbr.rel (%p197) target = $region32
      $region31: #{tpu_custom_call.1} parent=5 // pred_region
        // Predicated region
        $region33: #{tpu_custom_call.1} parent=31 // pred_check
          %p200 = pneg %p51
        $region34: #{tpu_custom_call.1} parent=31 // pred_check_branch
          %202 = sbr.rel (%p200) target = $region36
        $region35: #{tpu_custom_call.1} parent=31 // pred_region
          %s203 = sand.u32 %s41, 1
          %s204 = scalar_lea.sflag [#allocation3], %s203
          %s205 = sand.u32 %s41, 1
          %s206 = smul.addr %s205, 8
          %s207 = scalar_lea.vmem [#allocation2], %s206
          %s208 = smul.u32 2, %s25
          %s210 = ssub.s32 128, 128
          %211 = vsyncadd %s204, %s210
          %s212 = smul.addr %s24, 2
          %s213 = sadd.s32 %s208, %s212
          %s214 = smul.addr %s213, 64
          %s215 = scalar_lea.hbm %s0, %s214
          %s217 = sshll.u32 %s207, 4
          %s218 = int_to_ptr.vmem [resolvable:$true] %s217
          %220 = dma.hbm_to_vmem [thread:$0]  %s215, 128, %s218, %s204
        $region36: #{tpu_custom_call.1} parent=31 // pred_fallthru
          _
      $region32: #{tpu_custom_call.1} parent=5 // pred_fallthru
        _
      %p221 = scmp.le.s32.totalorder 1, %s17
      %p222 = scmp.lt.s32.totalorder %s17, 3
      %p223 = pnand %p221, %p222
      %p224 = pneg %p223
      // Predicated region
      $region37: #{tpu_custom_call.1} parent=5 // pred_check
        _
      $region38: #{tpu_custom_call.1} parent=5 // pred_check_branch
        %226 = sbr.rel (%p223) target = $region40
      $region39: #{tpu_custom_call.1} parent=5 // pred_region
        %s227 = ssub.s32 %s17, 1
        %s228 = sand.u32 %s44, 1
        %s229 = scalar_lea.sflag [#allocation3], %s228
        %s230 = sand.u32 %s44, 1
        %s231 = smul.addr %s230, 8
        %s232 = scalar_lea.vmem [#allocation2], %s231
        // Predicated region
        $region41: #{tpu_custom_call.1} parent=39 // pred_check
          %p233 = pneg %p57
        $region42: #{tpu_custom_call.1} parent=39 // pred_check_branch
          %235 = sbr.rel (%p233) target = $region44
        $region43: #{tpu_custom_call.1} parent=39 // pred_region
          %236 = dma.done %s229, 128
        $region44: #{tpu_custom_call.1} parent=39 // pred_fallthru
          _
        %s237 = sand.u32 %s44, 1
        %s238 = scalar_lea.sflag [#allocation3], %s237
        %s239 = sand.u32 %s44, 1
        %s240 = smul.addr %s239, 8
        %s241 = scalar_lea.vmem [#allocation2], %s240
        %p242 = pneg %p57
        %p243 = pneg %p54
        %p244 = pneg %p78
        %p245 = pneg %p75
        %p246 = pneg %p99
        %p247 = pneg %p96
        %p248 = pneg %p120
        %p249 = pneg %p117
        %p250 = pneg %p141
        %p251 = pneg %p138
        %p252 = pneg %p169
        %p253 = pneg %p166
        %s254 = sand.u32 %s156, 1
        %s255 = scalar_lea.sflag [#allocation4], %s254
        %s256 = sand.u32 %s156, 1
        %s257 = smul.addr %s256, 8
        %s258 = scalar_lea.vmem [#allocation5], %s257
        %s259 = smul.u32 2, %s27
        %s260 = smul.u32 2, %s27
        %v261 = vld [vmem:[%s1] sm:$0xf]
        %v262 = vld [vmem:[%s2] sm:$0xf]
        %v263 = vld [vmem:[%s3] sm:$0xf]
        %v264 = vld [vmem:[%s4] sm:$0xf]
        %v265 = vld [vmem:[%s232] sm:$0xff]
        %v267 = vlaneseq
        %v268 = vshrl.u32 %v267, 7
        %v269 = vsub.s32 0, %v268
        %v270 = vrot.slane %v265, %v269
        %v271 = vlaneseq
        %v272 = vshrl.u32 %v271, 7
        %v273 = vsub.s32 4, %v272
        %v274 = vrot.slane %v265, %v273
        %v277 = vlaneseq
        %v278 = vshrl.u32 %v277, 7
        %v279 = vsub.s32 0, %v278
        %v280 = vrot.slane %v270, %v279
        %v281 = vlaneseq
        %v282 = vshrl.u32 %v281, 7
        %v283 = vsub.s32 0, %v282
        %v284 = vrot.slane %v274, %v283
        %286 = vset.pattern.permute.xlu0 0
        %287 = vperm.xlu0 %286, %v261
        %v288 = vpop.permute.xlu0 %287
        %v290 = vmul.f32 %v288, %v280
        %v291 = vmul.f32 %v288, %v284
        %v292 = vlaneseq
        %v293 = vshrl.u32 %v292, 7
        %v294 = vsub.s32 1, %v293
        %v295 = vrot.slane %v265, %v294
        %v296 = vlaneseq
        %v297 = vshrl.u32 %v296, 7
        %v298 = vsub.s32 5, %v297
        %v299 = vrot.slane %v265, %v298
        %v302 = vlaneseq
        %v303 = vshrl.u32 %v302, 7
        %v304 = vsub.s32 1, %v303
        %v305 = vrot.slane %v295, %v304
        %v306 = vlaneseq
        %v307 = vshrl.u32 %v306, 7
        %v308 = vsub.s32 1, %v307
        %v309 = vrot.slane %v299, %v308
        %310 = vset.pattern.permute.xlu0 1
        %311 = vperm.xlu0 %310, %v261
        %v312 = vpop.permute.xlu0 %311
        %v314 = vmul.f32 %v312, %v305
        %v315 = vmul.f32 %v312, %v309
        %v316 = vadd.f32 %v290, %v314
        %v317 = vadd.f32 %v291, %v315
        %v318 = vlaneseq
        %v319 = vshrl.u32 %v318, 7
        %v320 = vsub.s32 2, %v319
        %v321 = vrot.slane %v265, %v320
        %v322 = vlaneseq
        %v323 = vshrl.u32 %v322, 7
        %v324 = vsub.s32 6, %v323
        %v325 = vrot.slane %v265, %v324
        %v328 = vlaneseq
        %v329 = vshrl.u32 %v328, 7
        %v330 = vsub.s32 2, %v329
        %v331 = vrot.slane %v321, %v330
        %v332 = vlaneseq
        %v333 = vshrl.u32 %v332, 7
        %v334 = vsub.s32 2, %v333
        %v335 = vrot.slane %v325, %v334
        %336 = vset.pattern.permute.xlu0 2
        %337 = vperm.xlu0 %336, %v261
        %v338 = vpop.permute.xlu0 %337
        %v340 = vmul.f32 %v338, %v331
        %v341 = vmul.f32 %v338, %v335
        %v342 = vadd.f32 %v316, %v340
        %v343 = vadd.f32 %v317, %v341
        %v344 = vlaneseq
        %v345 = vshrl.u32 %v344, 7
        %v346 = vsub.s32 3, %v345
        %v347 = vrot.slane %v265, %v346
        %v348 = vlaneseq
        %v349 = vshrl.u32 %v348, 7
        %v350 = vsub.s32 7, %v349
        %v351 = vrot.slane %v265, %v350
        %v354 = vlaneseq
        %v355 = vshrl.u32 %v354, 7
        %v356 = vsub.s32 3, %v355
        %v357 = vrot.slane %v347, %v356
        %v358 = vlaneseq
        %v359 = vshrl.u32 %v358, 7
        %v360 = vsub.s32 3, %v359
        %v361 = vrot.slane %v351, %v360
        %362 = vset.pattern.permute.xlu0 3
        %363 = vperm.xlu0 %362, %v261
        %v364 = vpop.permute.xlu0 %363
        %v366 = vmul.f32 %v364, %v357
        %v367 = vmul.f32 %v364, %v361
        %v368 = vadd.f32 %v342, %v366
        %v369 = vadd.f32 %v343, %v367
        %371 = vset.pattern.permute.xlu0 0
        %372 = vperm.xlu0 %371, %v262
        %v373 = vpop.permute.xlu0 %372
        %v375 = vadd.f32 %v368, %v373
        %v376 = vadd.f32 %v369, %v373
        %v377 = vtanh.pop %v375
        %v378 = vtanh.pop %v376
        %v379 = vlaneseq
        %v380 = vshrl.u32 %v379, 7
        %v381 = vsub.s32 0, %v380
        %v382 = vrot.slane %v377, %v381
        %v383 = vlaneseq
        %v384 = vshrl.u32 %v383, 7
        %v385 = vsub.s32 0, %v384
        %v386 = vrot.slane %v378, %v385
        %388 = vset.pattern.permute.xlu0 0
        %389 = vperm.xlu0 %388, %v263
        %v390 = vpop.permute.xlu0 %389
        %v392 = vmul.f32 %v390, %v382
        %v393 = vmul.f32 %v390, %v386
        %v394 = vlaneseq
        %v395 = vshrl.u32 %v394, 7
        %v396 = vsub.s32 1, %v395
        %v397 = vrot.slane %v377, %v396
        %v398 = vlaneseq
        %v399 = vshrl.u32 %v398, 7
        %v400 = vsub.s32 1, %v399
        %v401 = vrot.slane %v378, %v400
        %402 = vset.pattern.permute.xlu0 1
        %403 = vperm.xlu0 %402, %v263
        %v404 = vpop.permute.xlu0 %403
        %v406 = vmul.f32 %v404, %v397
        %v407 = vmul.f32 %v404, %v401
        %v408 = vadd.f32 %v392, %v406
        %v409 = vadd.f32 %v393, %v407
        %v410 = vlaneseq
        %v411 = vshrl.u32 %v410, 7
        %v412 = vsub.s32 2, %v411
        %v413 = vrot.slane %v377, %v412
        %v414 = vlaneseq
        %v415 = vshrl.u32 %v414, 7
        %v416 = vsub.s32 2, %v415
        %v417 = vrot.slane %v378, %v416
        %418 = vset.pattern.permute.xlu0 2
        %419 = vperm.xlu0 %418, %v263
        %v420 = vpop.permute.xlu0 %419
        %v422 = vmul.f32 %v420, %v413
        %v423 = vmul.f32 %v420, %v417
        %v424 = vadd.f32 %v408, %v422
        %v425 = vadd.f32 %v409, %v423
        %v426 = vlaneseq
        %v427 = vshrl.u32 %v426, 7
        %v428 = vsub.s32 3, %v427
        %v429 = vrot.slane %v377, %v428
        %v430 = vlaneseq
        %v431 = vshrl.u32 %v430, 7
        %v432 = vsub.s32 3, %v431
        %v433 = vrot.slane %v378, %v432
        %434 = vset.pattern.permute.xlu0 3
        %435 = vperm.xlu0 %434, %v263
        %v436 = vpop.permute.xlu0 %435
        %v438 = vmul.f32 %v436, %v429
        %v439 = vmul.f32 %v436, %v433
        %v440 = vadd.f32 %v424, %v438
        %v441 = vadd.f32 %v425, %v439
        %443 = vset.pattern.permute.xlu0 0
        %444 = vperm.xlu0 %443, %v264
        %v445 = vpop.permute.xlu0 %444
        %v447 = vadd.f32 %v440, %v445
        %v448 = vadd.f32 %v441, %v445
        %v451 = vcombine.low %v447, %v448
        %453 = vst [vmem:[%s258] sm:$0xff] %v451
        %s454 = sand.u32 %s156, 1
        %s455 = scalar_lea.sflag [#allocation4], %s454
        %s456 = sand.u32 %s156, 1
        %s457 = smul.addr %s456, 8
        %s458 = scalar_lea.vmem [#allocation5], %s457
        // Predicated region
        $region45: #{tpu_custom_call.1} parent=39 // pred_check
          %p459 = pneg %p166
        $region46: #{tpu_custom_call.1} parent=39 // pred_check_branch
          %461 = sbr.rel (%p459) target = $region48
        $region47: #{tpu_custom_call.1} parent=39 // pred_region
          %s462 = smul.u32 2, %s27
          %s464 = ssub.s32 128, 128
          %465 = vsyncadd %s455, %s464
          %s466 = smul.addr %s26, 2
          %s467 = sadd.s32 %s462, %s466
          %s468 = smul.addr %s467, 64
          %s469 = scalar_lea.hbm %s5, %s468
          %s471 = sshll.u32 %s458, 4
          %s472 = int_to_ptr.vmem [resolvable:$true] %s471
          %474 = dma.vmem_to_hbm [thread:$0]  %s472, 128, %s469, %s455
        $region48: #{tpu_custom_call.1} parent=39 // pred_fallthru
          _
      $region40: #{tpu_custom_call.1} parent=5 // pred_fallthru
        _
      %p475 = scmp.le.s32.totalorder 2, %s17
      // Predicated region
      $region49: #{tpu_custom_call.1} parent=5 // pred_check
        %p476 = pneg %p475
      $region50: #{tpu_custom_call.1} parent=5 // pred_check_branch
        %478 = sbr.rel (%p476) target = $region52
      $region51: #{tpu_custom_call.1} parent=5 // pred_region
        %s479 = ssub.s32 %s17, 2
        // Predicated region
        $region53: #{tpu_custom_call.1} parent=51 // pred_check
          %p480 = pneg %p172
        $region54: #{tpu_custom_call.1} parent=51 // pred_check_branch
          %482 = sbr.rel (%p480) target = $region56
        $region55: #{tpu_custom_call.1} parent=51 // pred_region
          %s483 = sand.u32 %s157, 1
          %s484 = scalar_lea.sflag [#allocation4], %s483
          %s485 = sand.u32 %s157, 1
          %s486 = smul.addr %s485, 8
          %s487 = scalar_lea.vmem [#allocation5], %s486
          %488 = dma.done %s484, 128
        $region56: #{tpu_custom_call.1} parent=51 // pred_fallthru
          _
      $region52: #{tpu_custom_call.1} parent=5 // pred_fallthru
        _
    $region6: #{tpu_custom_call.1} parent=1 // loop_footer
      %s21 = sadd.s32 1, %s17
    $region7: #{tpu_custom_call.1} parent=1 // loop_footer_branch
      %16 = sbr.rel target = $region3
    $region8: #{tpu_custom_call.1} parent=1 // loop_exit
      _
    %489 = vsyncpa [#allocation3], 1
    %s490 = scalar_lea.sflag [#allocation3], 1
    %491 = vsyncpa %s490, 1
    %492 = vsyncpa [#allocation4], 1
    %s493 = scalar_lea.sflag [#allocation4], 1
    %494 = vsyncpa %s493, 1

</llo_original>
